<compile_context>
chip_gen: v7x
topology: tpu7x:2x2x1
jax: 0.10.0
libtpu: 0.0.40
codegen_flags: <defaults>
</compile_context>

<pallas_src>
import jax
import jax.numpy as jnp
from jax.experimental import pallas as pl
from jax.experimental.pallas import tpu as pltpu


def _round_up(x, m):
    return (x + m - 1) // m * m


def _spatial_attention_kernel(x_ref, wb1_ref, b2_ref, out_ref, att_ref):
    # x_ref:   (Bt, C, T)   input tile (channels on sublanes, spatial on lanes)
    # wb1_ref: (Cr, C + 2)  [W1 | b1 | w2] packed, x-dtype, VMEM (resident)
    # b2_ref:  (1,)         conv2 bias, f32, SMEM
    # out_ref: (Bt, C, T)   gated output
    # att_ref: (Bt, 1, T)   attention map
    wb1 = wb1_ref[...]
    C = x_ref.shape[1]
    w1 = wb1[:, :C]                     # (Cr, C)
    b1 = wb1[:, C:C + 1]                # (Cr, 1)
    w2 = wb1[:, C + 1:C + 2]            # (Cr, 1)
    b2 = b2_ref[0]
    Bt = x_ref.shape[0]

    for b in range(Bt):                 # Bt is small and static -> unrolls
        x = x_ref[b]                                                # (C, T)
        # conv1 (1x1): (Cr, C) @ (C, T) on the MXU, f32 accumulate, + bias, ReLU.
        h = jnp.dot(w1, x, preferred_element_type=jnp.float32)     # (Cr, T) f32
        h = jnp.maximum(h + b1, 0.0)
        # conv2 (1x1, Cr -> 1): broadcast-mul + sublane reduce (XLU), + bias.
        logit = jnp.sum(h * w2, axis=0, keepdims=True) + b2        # (1, T) f32
        att = jax.nn.sigmoid(logit)
        att_ref[b] = att.astype(att_ref.dtype)
        # Gate in the input dtype (broadcast over channel sublanes).
        out_ref[b] = (x * att.astype(x.dtype)).astype(out_ref.dtype)


def _pick_spatial_tile(HW, target_lanes):
    """Return (tile, hw_pad): tile is a multiple of 128 dividing hw_pad; in the
    common path hw_pad = round_up(HW, 128) so padding is at most 127 lanes."""
    hw_pad = _round_up(HW, 128)
    target = max(128, (min(target_lanes, hw_pad) // 128) * 128)
    n = hw_pad // 128
    tile = 128
    for d in range(1, n + 1):
        t = d * 128
        if t > target:
            break
        if hw_pad % t == 0:
            tile = t
    # Awkward divisor structure (e.g. prime lane count): accept extra padding to
    # keep big, roofline-friendly tiles rather than a 128-lane-per-step grid.
    if hw_pad > target and tile * 4 < target:
        tile = target
        hw_pad = _round_up(HW, tile)
    return tile, hw_pad


def _pick_batch_block(B, C, tile, itemsize, spatial_steps,
                      max_bt=8, target_bytes=2 << 20):
    """Block several images per grid step when the spatial tile is small, keeping
    at least 2 total grid steps whenever B >= 2 (megacore balance on v7x)."""
    if spatial_steps > 1 or B <= 1:
        return 1
    for bt in range(min(B, max_bt), 0, -1):
        if B % bt:
            continue
        if bt * C * tile * itemsize > target_bytes:
            continue
        if B >= 2 and B // bt < 2:
            continue
        return bt
    return 1


def spatial_attention(x_nchw, w1, b1, w2, b2, *, tile_hw=8192):
    """x_nchw: (B, C, H, W);  w1: (Cr, C);  b1: (Cr,);  w2: (Cr,);  b2: scalar.

    Weights follow the PyTorch Conv2d layout with the trailing 1x1 dims dropped.
    Returns (attended_x (B, C, H, W), attention_map (B, 1, H, W)).
    """
    B, C, H, W = x_nchw.shape
    Cr = w1.shape[0]
    HW = H * W
    dtype = x_nchw.dtype
    itemsize = jnp.dtype(dtype).itemsize

    # NCHW-native: pure reshape (free), no transpose.
    x3 = x_nchw.reshape(B, C, HW)

    tile, hw_pad = _pick_spatial_tile(HW, tile_hw)
    if hw_pad != HW:
        # Common path pads at most 127 lanes (only when HW % 128 != 0).
        x3 = jnp.pad(x3, ((0, 0), (0, 0), (0, hw_pad - HW)))
    spatial_steps = hw_pad // tile

    bt = _pick_batch_block(B, C, tile, itemsize, spatial_steps)
    grid = (B // bt, spatial_steps)

    # Consolidated parameters: [W1 | b1 | w2] in VMEM in the x dtype (no in-kernel
    # upcast of the x tile); b2 as an f32 SMEM scalar.
    wb1 = jnp.concatenate(
        [w1, b1[:, None], w2.reshape(-1, 1)], axis=1).astype(dtype)       # (Cr, C+2)
    b2s = jnp.reshape(b2, (1,)).astype(jnp.float32)

    # Raise the scoped-VMEM limit only if the chosen blocks actually need it.
    block_bytes = bt * tile * (2 * C + 1) * itemsize          # x + out + att per step
    vmem_needed = 2 * block_bytes + wb1.size * wb1.dtype.itemsize
    cp_kwargs = dict(dimension_semantics=("parallel", "parallel"))
    if vmem_needed > (12 << 20):
        cp_kwargs["vmem_limit_bytes"] = int(
            min(max(3 * vmem_needed // 2, 32 << 20), 56 << 20))

    # Advisory cost estimate: memory bound (read x, write x-sized out + att map).
    n_pos = B * HW
    cost = pl.CostEstimate(
        flops=n_pos * (2 * C * Cr + 4 * Cr + C),
        transcendentals=n_pos,                                  # sigmoid
        bytes_accessed=(2 * n_pos * C + n_pos) * itemsize,
    )

    out3, att3 = pl.pallas_call(
        _spatial_attention_kernel,
        out_shape=(
            jax.ShapeDtypeStruct((B, C, hw_pad), dtype),
            jax.ShapeDtypeStruct((B, 1, hw_pad), dtype),
        ),
        grid_spec=pltpu.PrefetchScalarGridSpec(
            num_scalar_prefetch=0,
            grid=grid,
            in_specs=[
                pl.BlockSpec((bt, C, tile), lambda b, s: (b, 0, s)),      # x tile
                pl.BlockSpec((Cr, C + 2), lambda b, s: (0, 0)),           # [W1|b1|w2]
                pl.BlockSpec(memory_space=pltpu.MemorySpace.SMEM),        # b2
            ],
            out_specs=[
                pl.BlockSpec((bt, C, tile), lambda b, s: (b, 0, s)),      # attended
                pl.BlockSpec((bt, 1, tile), lambda b, s: (b, 0, s)),      # attention map
            ],
        ),
        compiler_params=pltpu.CompilerParams(**cp_kwargs),
        cost_estimate=cost,
    )(x3, wb1, b2s)

    if hw_pad != HW:
        out3 = out3[:, :, :HW]
        att3 = att3[:, :, :HW]
    return out3.reshape(B, C, H, W), att3.reshape(B, 1, H, W)


def _reference(x, w1, b1, w2, b2):
    # Pure-JAX reference matching the PyTorch module (1x1 convs == channel matmuls).
    B, C, H, W = x.shape
    xf = jnp.transpose(x, (0, 2, 3, 1)).reshape(-1, C).astype(jnp.float32)   # (N, C)
    h = jnp.maximum(xf @ w1.T + b1[None, :], 0.0)                            # (N, Cr)
    logit = jnp.sum(h * w2[None, :], axis=1, keepdims=True) + b2             # (N, 1)
    a = jax.nn.sigmoid(logit)
    att = jnp.transpose(a.reshape(B, H, W, 1), (0, 3, 1, 2)).astype(x.dtype) # (B,1,H,W)
    return x * att, att


if __name__ == "__main__":
    # Module config: in_channels=32, reduction=16 -> reduced channels Cr = 2.
    B, C, H, W = 2, 32, 16, 16
    reduction = 16
    Cr = C // reduction

    key = jax.random.PRNGKey(0)
    kx, k1, k2, k3, k4 = jax.random.split(key, 5)

    x = jax.random.normal(kx, (B, C, H, W), dtype=jnp.float32)

    # PyTorch conv weights are (out, in, 1, 1); stored here with the 1x1 dims dropped.
    w1 = jax.random.normal(k1, (Cr, C), dtype=jnp.float32) * 0.1   # conv1.weight
    b1 = jax.random.normal(k2, (Cr,), dtype=jnp.float32) * 0.1     # conv1.bias
    w2 = jax.random.normal(k3, (Cr,), dtype=jnp.float32) * 0.1     # conv2.weight
    b2 = jax.random.normal(k4, (), dtype=jnp.float32) * 0.1        # conv2.bias

    attended, att_map = spatial_attention(x, w1, b1, w2, b2)
    jax.block_until_ready(attended)
    jax.block_until_ready(att_map)

    ref_attended, ref_att = _reference(x, w1, b1, w2, b2)
    assert attended.shape == (B, C, H, W)
    assert att_map.shape == (B, 1, H, W)
    # Tolerance allows for MXU f32 matmul pass differences between kernel and XLA ref.
    assert jnp.allclose(attended, ref_attended, atol=1e-4, rtol=1e-4)
    assert jnp.allclose(att_map, ref_att, atol=1e-4, rtol=1e-4)

    print("KERNEL_OK")
</pallas_src>

<mosaic_0001>
module attributes {stable_mosaic.version = 11 : i64} {
  func.func @_spatial_attention_kernel(%arg0: i32, %arg1: i32, %arg2: memref<1x32x256xf32, #tpu.memory_space<vmem>>, %arg3: memref<2x34xf32, #tpu.memory_space<vmem>>, %arg4: memref<1xf32, #tpu.memory_space<smem>>, %arg5: memref<1x32x256xf32, #tpu.memory_space<vmem>>, %arg6: memref<1x1x256xf32, #tpu.memory_space<vmem>>) attributes {dimension_semantics = [#tpu.dimension_semantics<parallel>, #tpu.dimension_semantics<parallel>], iteration_bounds = array<i64: 2, 1>, scalar_prefetch = 0 : i64, scratch_operands = 0 : i64, tpu.core_type = #tpu.core_type<tc>, window_params = [{transform_indices = @transform_0, window_bounds = array<i64: 1, 32, 256>}, {pipeline_mode = #tpu.pipeline_mode<synchronous>, transform_indices = @transform_1, window_bounds = array<i64: 2, 34>}, {transform_indices = @transform_2, window_bounds = array<i64: 1>}, {transform_indices = @transform_3, window_bounds = array<i64: 1, 32, 256>}, {transform_indices = @transform_4, window_bounds = array<i64: 1, 1, 256>}]} {
    %c0 = arith.constant 0 : index
    %c0_0 = arith.constant 0 : index
    %0 = vector.load %arg3[%c0, %c0_0] : memref<2x34xf32, #tpu.memory_space<vmem>>, vector<2x34xf32>
    %1 = vector.extract_strided_slice %0 {offsets = [0, 0], sizes = [2, 32], strides = [1, 1]} : vector<2x34xf32> to vector<2x32xf32>
    %2 = vector.extract_strided_slice %0 {offsets = [0, 32], sizes = [2, 1], strides = [1, 1]} : vector<2x34xf32> to vector<2x1xf32>
    %3 = vector.extract_strided_slice %0 {offsets = [0, 33], sizes = [2, 1], strides = [1, 1]} : vector<2x34xf32> to vector<2x1xf32>
    %c0_1 = arith.constant 0 : index
    %4 = memref.load %arg4[%c0_1] : memref<1xf32, #tpu.memory_space<smem>>
    %c0_2 = arith.constant 0 : index
    %c0_3 = arith.constant 0 : index
    %c0_4 = arith.constant 0 : index
    %5 = vector.load %arg2[%c0_2, %c0_3, %c0_4] : memref<1x32x256xf32, #tpu.memory_space<vmem>>, vector<1x32x256xf32>
    %6 = vector.shape_cast %5 : vector<1x32x256xf32> to vector<32x256xf32>
    %cst = arith.constant dense<0.000000e+00> : vector<2x256xf32>
    %7 = tpu.matmul %1, %6, %cst {dimension_numbers = #tpu.dot_dimension_numbers<[1], [0], [0], [1], [0, 0, 1, 1], [], []>} : vector<2x32xf32>, vector<32x256xf32>, vector<2x256xf32> -> vector<2x256xf32>
    %8 = vector.broadcast %2 : vector<2x1xf32> to vector<2x256xf32>
    %9 = arith.addf %7, %8 : vector<2x256xf32>
    %cst_5 = arith.constant 0.000000e+00 : f32
    %10 = vector.broadcast %cst_5 : f32 to vector<2x256xf32>
    %11 = arith.maximumf %9, %10 : vector<2x256xf32>
    %12 = vector.broadcast %3 : vector<2x1xf32> to vector<2x256xf32>
    %13 = arith.mulf %11, %12 : vector<2x256xf32>
    %cst_6 = arith.constant dense<0.000000e+00> : vector<256xf32>
    %14 = vector.multi_reduction <add>, %13, %cst_6 [0] : vector<2x256xf32> to vector<256xf32>
    %15 = vector.shape_cast %14 : vector<256xf32> to vector<1x256xf32>
    %16 = vector.broadcast %4 : f32 to vector<1x256xf32>
    %17 = arith.addf %15, %16 : vector<1x256xf32>
    %18 = arith.negf %17 : vector<1x256xf32>
    %19 = math.exp %18 : vector<1x256xf32>
    %cst_7 = arith.constant 1.000000e+00 : f32
    %20 = vector.broadcast %cst_7 : f32 to vector<1x256xf32>
    %21 = arith.addf %20, %19 : vector<1x256xf32>
    %22 = arith.divf %20, %21 : vector<1x256xf32>
    %c0_8 = arith.constant 0 : index
    %c0_9 = arith.constant 0 : index
    %c0_10 = arith.constant 0 : index
    %23 = vector.load %arg6[%c0_8, %c0_9, %c0_10] : memref<1x1x256xf32, #tpu.memory_space<vmem>>, vector<1x1x256xf32>
    %24 = vector.shape_cast %23 : vector<1x1x256xf32> to vector<1x256xf32>
    %25 = vector.shape_cast %22 : vector<1x256xf32> to vector<1x1x256xf32>
    tpu.vector_store %arg6[%c0_8, %c0_9, %c0_10], %25 {strides = array<i32>} : memref<1x1x256xf32, #tpu.memory_space<vmem>>, vector<1x1x256xf32>,
    %26 = vector.broadcast %22 : vector<1x256xf32> to vector<32x256xf32>
    %27 = arith.mulf %6, %26 : vector<32x256xf32>
    %c0_11 = arith.constant 0 : index
    %c0_12 = arith.constant 0 : index
    %c0_13 = arith.constant 0 : index
    %28 = vector.load %arg5[%c0_11, %c0_12, %c0_13] : memref<1x32x256xf32, #tpu.memory_space<vmem>>, vector<1x32x256xf32>
    %29 = vector.shape_cast %28 : vector<1x32x256xf32> to vector<32x256xf32>
    %30 = vector.shape_cast %27 : vector<32x256xf32> to vector<1x32x256xf32>
    tpu.vector_store %arg5[%c0_11, %c0_12, %c0_13], %30 {strides = array<i32>} : memref<1x32x256xf32, #tpu.memory_space<vmem>>, vector<1x32x256xf32>,
    return
  }
  func.func @transform_0(%arg0: i32, %arg1: i32) -> (i32, i32, i32) {
    %c0_i32 = arith.constant 0 : i32
    %c0_i32_0 = arith.constant 0 : i32
    return %arg0, %c0_i32, %arg1 : i32, i32, i32
  }
  func.func @transform_1(%arg0: i32, %arg1: i32) -> (i32, i32) {
    %c0_i32 = arith.constant 0 : i32
    %c0_i32_0 = arith.constant 0 : i32
    %c0_i32_1 = arith.constant 0 : i32
    return %c0_i32, %c0_i32_0 : i32, i32
  }
  func.func @transform_2(%arg0: i32, %arg1: i32) -> i32 {
    %c0_i32 = arith.constant 0 : i32
    %c0_i32_0 = arith.constant 0 : i32
    return %c0_i32 : i32
  }
  func.func @transform_3(%arg0: i32, %arg1: i32) -> (i32, i32, i32) {
    %c0_i32 = arith.constant 0 : i32
    %c0_i32_0 = arith.constant 0 : i32
    return %arg0, %c0_i32, %arg1 : i32, i32, i32
  }
  func.func @transform_4(%arg0: i32, %arg1: i32) -> (i32, i32, i32) {
    %c0_i32 = arith.constant 0 : i32
    %c0_i32_0 = arith.constant 0 : i32
    return %arg0, %c0_i32, %arg1 : i32, i32, i32
  }
}

</mosaic_0001>

<llo_original>
// kernel: tpu_custom_call.1
$region0: #{tpu_custom_call.1}
  #allocation0 [shape = 'u32[]', space=smem, size = 0x4, offset = 0x4, fixed_abs, tag = 'smem constant byte address 0x4 - core index']
  #allocation1 [shape = 'u32[144,128]{1,0:T(1,128)}', space=vmem, size = 0x12000, scoped, tag = 'internal scratch']
  #allocation2 [shape = 'f32[1]{0:T(128)S(6)}', space=smem, size = 0x200, scoped, tag = 'scoped memory for tpu_custom_call.1']
  %s0 = inlined_call_operand.hbm [shape: f32[2,32,256], index: 0, kind: input, shape index: {}]
  %s1 = inlined_call_operand.vmem [shape: f32[2,34], index: 1, kind: input, shape index: {}]
  %s2 = inlined_call_operand.<no memory space> [shape: f32[1], index: 2, kind: input, shape index: {}]
  %s3 = inlined_call_operand.hbm [shape: f32[2,32,256], index: 3, kind: output, shape index: {0}]
  %s4 = inlined_call_operand.hbm [shape: f32[2,1,256], index: 4, kind: output, shape index: {1}]
  %5 = xla_tuple %s3, %s4
  %s6 = sld [smem:[#allocation0]]
  $region57: #{tpu_custom_call.1} parent=0
    _
  %s8 = ssub.s32 1, %s6
  %s9 = scalar_select 0, %s8, %s6
  %10 = sst [smem:[#allocation2]] %s2
  $region1: #{tpu_custom_call.1} parent=0
    #allocation3 [shape = 'u8[65536]{0}', space=vmem, size = 0x10000, scoped, tag = 'input window, operand 0']
    #allocation4 [shape = 's32[2]{0}', space=sflag, size = 0x8, scoped, tag = 'scoped memory for tpu_custom_call.1']
    #allocation5 [shape = 's32[2]{0}', space=sflag, size = 0x8, scoped, tag = 'scoped memory for tpu_custom_call.1']
    #allocation6 [shape = 'u8[65536]{0}', space=vmem, size = 0x10000, scoped, tag = 'output window, operand 0']
    #allocation7 [shape = 'u8[2048]{0}', space=vmem, size = 0x800, scoped, tag = 'output window, operand 1']
    #allocation8 [shape = 's32[2]{0}', space=sflag, size = 0x8, scoped, tag = 'scoped memory for tpu_custom_call.1']
    %11 = vsyncpa [#allocation4], 0
    %s12 = scalar_lea.sflag [#allocation4], 1
    %13 = vsyncpa %s12, 0
    %14 = vsyncpa [#allocation5], 0
    %s15 = scalar_lea.sflag [#allocation5], 1
    %16 = vsyncpa %s15, 0
    %17 = vsyncpa [#allocation8], 0
    %s18 = scalar_lea.sflag [#allocation8], 1
    %19 = vsyncpa %s18, 0
    loop: start=0, step=1, limit=4
    $region2: #{tpu_custom_call.1} parent=1 // loop_pre_header
      _
    $region3: #{tpu_custom_call.1} parent=1 // loop_header
      %s21 = sphi 0, %s25
      %p22 = scmp.ge.s32.totalorder %s21, 4
      %s28 = sphi 0, %s40
      %s29 = sphi 0, %s36
      %s30 = sphi 0, %s28
      %s31 = sphi 0, %s29
      %s32 = sphi 0, %s30
      %s33 = sphi 0, %s31
      %s45 = sphi 0, %s47
      %s48 = sphi 0, %s45
      %s49 = sphi 0, %s48
      %s65 = sphi 0, %s49
      %s69 = sphi 0, %s69
      %s71 = sphi 0, %s69
      %s72 = sphi 0, %s71
      %s86 = sphi 0, %s72
      %s90 = sphi 0, %s90
      %s92 = sphi 0, %s90
      %s93 = sphi 0, %s92
      %s107 = sphi 0, %s93
      %s115 = sphi 0, %s117
      %s118 = sphi 0, %s115
      %s119 = sphi 0, %s118
      %s135 = sphi 0, %s119
      %s143 = sphi 0, %s145
      %s146 = sphi 0, %s143
      %s147 = sphi 0, %s146
      %s163 = sphi 0, %s147
    $region4: #{tpu_custom_call.1} parent=1 // loop_header_branch
      %24 = sbr.rel (%p22) target = $region8
    $region5: #{tpu_custom_call.1} parent=1 // loop_body
      %s26 = ssub.s32 %s21, 1
      %s27 = ssub.s32 %s21, 2
      %s34 = sadd.s32 1, %s29
      %p35 = scmp.ge.s32.totalorder %s34, 1
      %s36 = scalar_select %p35, 0, %s34
      %s37 = sadd.s32 1, %s28
      %s38 = scalar_select %p35, %s37, %s28
      %p39 = scmp.ge.s32.totalorder %s38, 2
      %s40 = scalar_select %p39, 0, %s38
      %s41 = ssub.s32 %s28, %s40
      %s42 = ssub.s32 %s29, %s36
      %s43 = sor.u32 %s41, %s42
      %p44 = scmp.eq.s32.totalorder %s43, 0
      %s46 = sadd.s32 %s45, 1
      %s47 = scalar_select %p44, %s45, %s46
      %p50 = pneg %p44
      %p51 = scmp.eq.s32.totalorder %s21, 1
      %p52 = por %p50, %p51
      %p53 = scmp.ne.s32.totalorder %s45, %s48
      %p54 = scmp.eq.s32.totalorder %s21, 0
      %p55 = por %p53, %p54
      %p56 = scmp.ne.s32.totalorder %s45, %s48
      %p57 = scmp.eq.s32.totalorder %s26, 1
      %p58 = por %p56, %p57
      %p59 = scmp.ne.s32.totalorder %s48, %s49
      %p60 = scmp.eq.s32.totalorder %s26, 0
      %p61 = por %p59, %p60
      %p62 = scmp.ne.s32.totalorder %s48, %s49
      %p63 = scmp.eq.s32.totalorder %s27, 1
      %p64 = por %p62, %p63
      %p66 = scmp.ne.s32.totalorder %s49, %s65
      %p67 = scmp.eq.s32.totalorder %s27, 0
      %p68 = por %p66, %p67
      %s70 = sadd.s32 %s69, 1
      %p73 = scmp.eq.s32.totalorder %s21, 1
      %p74 = scmp.ne.s32.totalorder %s69, %s71
      %p75 = scmp.eq.s32.totalorder %s21, 0
      %p76 = por %p74, %p75
      %p77 = scmp.ne.s32.totalorder %s69, %s71
      %p78 = scmp.eq.s32.totalorder %s26, 1
      %p79 = por %p77, %p78
      %p80 = scmp.ne.s32.totalorder %s71, %s72
      %p81 = scmp.eq.s32.totalorder %s26, 0
      %p82 = por %p80, %p81
      %p83 = scmp.ne.s32.totalorder %s71, %s72
      %p84 = scmp.eq.s32.totalorder %s27, 1
      %p85 = por %p83, %p84
      %p87 = scmp.ne.s32.totalorder %s72, %s86
      %p88 = scmp.eq.s32.totalorder %s27, 0
      %p89 = por %p87, %p88
      %s91 = sadd.s32 %s90, 1
      %p94 = scmp.eq.s32.totalorder %s21, 1
      %p95 = scmp.ne.s32.totalorder %s90, %s92
      %p96 = scmp.eq.s32.totalorder %s21, 0
      %p97 = por %p95, %p96
      %p98 = scmp.ne.s32.totalorder %s90, %s92
      %p99 = scmp.eq.s32.totalorder %s26, 1
      %p100 = por %p98, %p99
      %p101 = scmp.ne.s32.totalorder %s92, %s93
      %p102 = scmp.eq.s32.totalorder %s26, 0
      %p103 = por %p101, %p102
      %p104 = scmp.ne.s32.totalorder %s92, %s93
      %p105 = scmp.eq.s32.totalorder %s27, 1
      %p106 = por %p104, %p105
      %p108 = scmp.ne.s32.totalorder %s93, %s107
      %p109 = scmp.eq.s32.totalorder %s27, 0
      %p110 = por %p108, %p109
      %s111 = ssub.s32 %s28, %s40
      %s112 = ssub.s32 %s29, %s36
      %s113 = sor.u32 %s111, %s112
      %p114 = scmp.eq.s32.totalorder %s113, 0
      %s116 = sadd.s32 %s115, 1
      %s117 = scalar_select %p114, %s115, %s116
      %p120 = pneg %p114
      %p121 = scmp.eq.s32.totalorder %s21, 1
      %p122 = por %p120, %p121
      %p123 = scmp.ne.s32.totalorder %s115, %s118
      %p124 = scmp.eq.s32.totalorder %s21, 0
      %p125 = por %p123, %p124
      %p126 = scmp.ne.s32.totalorder %s115, %s118
      %p127 = scmp.eq.s32.totalorder %s26, 1
      %p128 = por %p126, %p127
      %p129 = scmp.ne.s32.totalorder %s118, %s119
      %p130 = scmp.eq.s32.totalorder %s26, 0
      %p131 = por %p129, %p130
      %p132 = scmp.ne.s32.totalorder %s118, %s119
      %p133 = scmp.eq.s32.totalorder %s27, 1
      %p134 = por %p132, %p133
      %p136 = scmp.ne.s32.totalorder %s119, %s135
      %p137 = scmp.eq.s32.totalorder %s27, 0
      %p138 = por %p136, %p137
      %s139 = ssub.s32 %s28, %s40
      %s140 = ssub.s32 %s29, %s36
      %s141 = sor.u32 %s139, %s140
      %p142 = scmp.eq.s32.totalorder %s141, 0
      %s144 = sadd.s32 %s143, 1
      %s145 = scalar_select %p142, %s143, %s144
      %p148 = pneg %p142
      %p149 = scmp.eq.s32.totalorder %s21, 1
      %p150 = por %p148, %p149
      %p151 = scmp.ne.s32.totalorder %s143, %s146
      %p152 = scmp.eq.s32.totalorder %s21, 0
      %p153 = por %p151, %p152
      %p154 = scmp.ne.s32.totalorder %s143, %s146
      %p155 = scmp.eq.s32.totalorder %s26, 1
      %p156 = por %p154, %p155
      %p157 = scmp.ne.s32.totalorder %s146, %s147
      %p158 = scmp.eq.s32.totalorder %s26, 0
      %p159 = por %p157, %p158
      %p160 = scmp.ne.s32.totalorder %s146, %s147
      %p161 = scmp.eq.s32.totalorder %s27, 1
      %p162 = por %p160, %p161
      %p164 = scmp.ne.s32.totalorder %s147, %s163
      %p165 = scmp.eq.s32.totalorder %s27, 0
      %p166 = por %p164, %p165
      %p167 = scmp.le.s32.totalorder 1, %s21
      %p168 = scmp.lt.s32.totalorder %s21, 3
      %p169 = pnand %p167, %p168
      %p170 = pneg %p169
      // Predicated region
      $region9: #{tpu_custom_call.1} parent=5 // pred_check
        _
      $region10: #{tpu_custom_call.1} parent=5 // pred_check_branch
        %172 = sbr.rel (%p169) target = $region12
      $region11: #{tpu_custom_call.1} parent=5 // pred_region
        %s173 = ssub.s32 %s21, 1
        // Predicated region
        $region13: #{tpu_custom_call.1} parent=11 // pred_check
          %p174 = pneg %p82
        $region14: #{tpu_custom_call.1} parent=11 // pred_check_branch
          %176 = sbr.rel (%p174) target = $region16
        $region15: #{tpu_custom_call.1} parent=11 // pred_region
          _
        $region16: #{tpu_custom_call.1} parent=11 // pred_fallthru
          _
        // Predicated region
        $region17: #{tpu_custom_call.1} parent=11 // pred_check
          %p177 = pneg %p103
        $region18: #{tpu_custom_call.1} parent=11 // pred_check_branch
          %179 = sbr.rel (%p177) target = $region20
        $region19: #{tpu_custom_call.1} parent=11 // pred_region
          _
        $region20: #{tpu_custom_call.1} parent=11 // pred_fallthru
          _
      $region12: #{tpu_custom_call.1} parent=5 // pred_fallthru
        _
      %p180 = scmp.lt.s32.totalorder %s21, 2
      // Predicated region
      $region21: #{tpu_custom_call.1} parent=5 // pred_check
        %p181 = pneg %p180
      $region22: #{tpu_custom_call.1} parent=5 // pred_check_branch
        %183 = sbr.rel (%p181) target = $region24
      $region23: #{tpu_custom_call.1} parent=5 // pred_region
        // Predicated region
        $region25: #{tpu_custom_call.1} parent=23 // pred_check
          %p184 = pneg %p55
        $region26: #{tpu_custom_call.1} parent=23 // pred_check_branch
          %186 = sbr.rel (%p184) target = $region28
        $region27: #{tpu_custom_call.1} parent=23 // pred_region
          %s187 = sand.u32 %s45, 1
          %s188 = scalar_lea.sflag [#allocation4], %s187
          %s189 = sand.u32 %s45, 1
          %s190 = smul.addr %s189, 64
          %s191 = scalar_lea.vmem [#allocation3], %s190
          %s192 = smul.u32 2, %s29
          %s194 = ssub.s32 1024, 1024
          %195 = vsyncadd %s188, %s194
          %s196 = smul.addr %s28, 8
          %s197 = sadd.s32 %s192, %s196
          %s198 = smul.addr %s197, 128
          %s199 = scalar_lea.hbm %s0, %s198
          %s200 = sshll.u32 %s191, 4
          %s201 = int_to_ptr.vmem [resolvable:$true] %s200
          %206 = dma.hbm_to_vmem [thread:$0]  %s199, 1024, %s201, %s188, 256, 256, 16
        $region28: #{tpu_custom_call.1} parent=23 // pred_fallthru
          _
      $region24: #{tpu_custom_call.1} parent=5 // pred_fallthru
        _
      %p207 = scmp.le.s32.totalorder 1, %s21
      %p208 = scmp.lt.s32.totalorder %s21, 3
      %p209 = pnand %p207, %p208
      %p210 = pneg %p209
      // Predicated region
      $region29: #{tpu_custom_call.1} parent=5 // pred_check
        _
      $region30: #{tpu_custom_call.1} parent=5 // pred_check_branch
        %212 = sbr.rel (%p209) target = $region32
      $region31: #{tpu_custom_call.1} parent=5 // pred_region
        %s213 = ssub.s32 %s21, 1
        %s214 = sand.u32 %s48, 1
        %s215 = scalar_lea.sflag [#allocation4], %s214
        %s216 = sand.u32 %s48, 1
        %s217 = smul.addr %s216, 64
        %s218 = scalar_lea.vmem [#allocation3], %s217
        // Predicated region
        $region33: #{tpu_custom_call.1} parent=31 // pred_check
          %p219 = pneg %p61
        $region34: #{tpu_custom_call.1} parent=31 // pred_check_branch
          %221 = sbr.rel (%p219) target = $region36
        $region35: #{tpu_custom_call.1} parent=31 // pred_region
          %222 = dma.done %s215, 1024
        $region36: #{tpu_custom_call.1} parent=31 // pred_fallthru
          _
        %s223 = sand.u32 %s48, 1
        %s224 = scalar_lea.sflag [#allocation4], %s223
        %s225 = sand.u32 %s48, 1
        %s226 = smul.addr %s225, 64
        %s227 = scalar_lea.vmem [#allocation3], %s226
        %p228 = pneg %p61
        %p229 = pneg %p58
        %p230 = pneg %p82
        %p231 = pneg %p79
        %p232 = pneg %p103
        %p233 = pneg %p100
        %p234 = pneg %p131
        %p235 = pneg %p128
        %s236 = sand.u32 %s118, 1
        %s237 = scalar_lea.sflag [#allocation5], %s236
        %s238 = sand.u32 %s118, 1
        %s239 = smul.addr %s238, 64
        %s240 = scalar_lea.vmem [#allocation6], %s239
        %p241 = pneg %p159
        %p242 = pneg %p156
        %s243 = sand.u32 %s146, 1
        %s244 = scalar_lea.sflag [#allocation8], %s243
        %s245 = sand.u32 %s146, 1
        %s246 = smul.addr %s245, 2
        %s247 = scalar_lea.vmem [#allocation7], %s246
        %s248 = smul.u32 2, %s31
        %s249 = smul.u32 2, %s31
        %s250 = smul.u32 2, %s31
        %v251 = vld [vmem:[%s1] sm:$0x3]
        %s252 = sld [smem:[#allocation2]]
        %v253 = vld [vmem:[%s218] sm:$0xff]
        %v254 = vld [vmem:[%s218 + $0x8] sm:$0xff]
        %v255 = vld [vmem:[%s218 + $0x10] sm:$0xff]
        %v256 = vld [vmem:[%s218 + $0x18] sm:$0xff]
        %v257 = vld [vmem:[%s218 + $0x20] sm:$0xff]
        %v258 = vld [vmem:[%s218 + $0x28] sm:$0xff]
        %v259 = vld [vmem:[%s218 + $0x30] sm:$0xff]
        %v260 = vld [vmem:[%s218 + $0x38] sm:$0xff]
        %262 = vset.pattern.permute.xlu0 32
        %263 = vperm.xlu0 %262, %v251
        %v264 = vpop.permute.xlu0 %263
        %vm266 = vcmask 261120
        %v267 = vsel %vm266, %v251, 0
        %269 = vmatprep.subr.mxu0 %v254
        %270 = vmatpush1.msra.mxu0 %v253
        %271 = vmatprep.subr.mxu0 %v256
        %272 = vmatpush1.msra.mxu0 %v255
        %273 = vmatprep.subr.mxu0 %v258
        %274 = vmatpush1.msra.mxu0 %v257
        %275 = vmatprep.subr.mxu0 %v260
        %276 = vmatpush1.msra.mxu0 %v259
        %277 = vmatprep.subr.mxu0 0.0
        %278 = vmatpush1.msra.mxu0 0.0
        %279 = vmatprep.subr.mxu0 0.0
        %280 = vmatpush1.msra.mxu0 0.0
        %281 = vmatprep.subr.mxu0 0.0
        %282 = vmatpush1.msra.mxu0 0.0
        %283 = vmatprep.subr.mxu0 0.0
        %284 = vmatpush1.msra.mxu0 0.0
        %285 = vmatprep.subr.mxu0 0.0
        %286 = vmatpush1.msra.mxu0 0.0
        %287 = vmatprep.subr.mxu0 0.0
        %288 = vmatpush1.msra.mxu0 0.0
        %289 = vmatprep.subr.mxu0 0.0
        %290 = vmatpush1.msra.mxu0 0.0
        %291 = vmatprep.subr.mxu0 0.0
        %292 = vmatpush1.msra.mxu0 0.0
        %293 = vmatprep.subr.mxu0 0.0
        %294 = vmatpush1.msra.mxu0 0.0
        %295 = vmatprep.subr.mxu0 0.0
        %296 = vmatpush1.msra.mxu0 0.0
        %297 = vmatprep.subr.mxu0 0.0
        %298 = vmatpush1.msra.mxu0 0.0
        %299 = vmatprep.subr.mxu0 0.0
        %300 = vmatpush1.msra.mxu0 0.0
        %301 = vmatprep.subr.mxu0 0.0
        %302 = vmatpush1.msra.mxu0 0.0
        %303 = vmatprep.subr.mxu0 0.0
        %304 = vmatpush1.msra.mxu0 0.0
        %305 = vmatprep.subr.mxu0 0.0
        %306 = vmatpush1.msra.mxu0 0.0
        %307 = vmatprep.subr.mxu0 0.0
        %308 = vmatpush1.msra.mxu0 0.0
        %309 = vmatprep.subr.mxu0 0.0
        %310 = vmatpush1.msra.mxu0 0.0
        %311 = vmatprep.subr.mxu0 0.0
        %312 = vmatpush1.msra.mxu0 0.0
        %313 = vmatprep.subr.mxu0 0.0
        %314 = vmatpush1.msra.mxu0 0.0
        %315 = vmatprep.subr.mxu0 0.0
        %316 = vmatpush1.msra.mxu0 0.0
        %317 = vmatprep.subr.mxu0 0.0
        %318 = vmatpush1.msra.mxu0 0.0
        %319 = vmatprep.subr.mxu0 0.0
        %320 = vmatpush1.msra.mxu0 0.0
        %321 = vmatprep.subr.mxu0 0.0
        %322 = vmatpush1.msra.mxu0 0.0
        %323 = vmatprep.subr.mxu0 0.0
        %324 = vmatpush1.msra.mxu0 0.0
        %325 = vmatprep.subr.mxu0 0.0
        %326 = vmatpush1.msra.mxu0 0.0
        %327 = vmatprep.subr.mxu0 0.0
        %328 = vmatpush1.msra.mxu0 0.0
        %329 = vmatprep.subr.mxu0 0.0
        %330 = vmatpush1.msra.mxu0 0.0
        %331 = vmatprep.subr.mxu0 0.0
        %332 = vmatpush1.msra.mxu0 0.0
        %333 = vmatprep.mubr.f32.mxu0 0.0
        %334 = vmatmul.mubr.f32.gmra.mrb[0].mxu0 %v267
        %v335 = vpop.f32.mrb[0].mxu0
        %v336 = vadd.f32 %v264, %v335
        %v337 = vpop.f32.mrb[0].mxu0
        %v338 = vadd.f32 %v264, %v337
        %339 = vdwg.mxu0
        %v340 = vmax.f32 %v336, 0.0
        %v341 = vmax.f32 %v338, 0.0
        %342 = vset.pattern.permute.xlu0 33
        %343 = vperm.xlu0 %342, %v251
        %v344 = vpop.permute.xlu0 %343
        %v346 = vmul.f32 %v340, %v344
        %v347 = vmul.f32 %v341, %v344
        %vm348 = vcmask 1041408
        %v349 = vsel %vm348, %v346, 0.0
        %v350 = vrot.slane %v349, 4
        %v351 = vadd.f32 %v349, %v350
        %v352 = vrot.slane %v351, 2
        %v353 = vadd.f32 %v351, %v352
        %v354 = vrot.slane %v353, 1
        %v355 = vadd.f32 %v353, %v354
        %v356 = vsel %vm348, %v347, 0.0
        %v357 = vrot.slane %v356, 4
        %v358 = vadd.f32 %v356, %v357
        %v359 = vrot.slane %v358, 2
        %v360 = vadd.f32 %v358, %v359
        %v361 = vrot.slane %v360, 1
        %v362 = vadd.f32 %v360, %v361
        %v363 = vstv %s252
        %v364 = vadd.f32 %v355, %v363
        %v365 = vadd.f32 %v362, %v363
        %v366 = vxor.u32 %v364, 2147483648
        %v367 = vxor.u32 %v365, 2147483648
        %v368 = vmul.f32 %v366, 1.442695
        %v369 = vpow.pop %v368
        %v370 = vmul.f32 %v367, 1.442695
        %v371 = vpow.pop %v370
        %v372 = vadd.f32 %v369, 1.0
        %v373 = vadd.f32 %v371, 1.0
        %v374 = vrcp.pop %v372
        %v375 = vmul.f32 1.0, %v374
        %v376 = vrcp.pop %v373
        %v377 = vmul.f32 1.0, %v376
        %v380 = vcombine.low %v375, %v377
        %v382 = vunpack.c.l.s4 1966171168
        %v383 = vunpack.c.0.s8 %v382
        %v384 = vlaneseq
        %v385 = vshrl.u32 %v384, 7
        %v386 = vsub.s32 %v383, %v385
        %v387 = vrot.slane %v380, %v386
        %v389 = vunpack.c.l.s4 1966171168
        %v390 = vunpack.c.0.s8 %v389
        %v391 = vlaneseq
        %v392 = vshrl.u32 %v391, 7
        %v393 = vsub.s32 %v390, %v392
        %v394 = vrot.slane %v387, %v393
        %v396 = vlaneseq
        %vm397 = vcmp.ge.s32.totalorder %v396, 0
        %vm398 = vcmp.lt.s32.totalorder %v396, 256
        %vm399 = vmand %vm397, %vm398
        %400 = vst.msk [vmem:[%s247] sm:$0x3] %vm399, %v394
        %v401 = vmul.f32 %v253, %v375
        %v402 = vmul.f32 %v254, %v377
        %v403 = vmul.f32 %v255, %v375
        %v404 = vmul.f32 %v256, %v377
        %v405 = vmul.f32 %v257, %v375
        %v406 = vmul.f32 %v258, %v377
        %v407 = vmul.f32 %v259, %v375
        %v408 = vmul.f32 %v260, %v377
        %409 = vst [vmem:[%s240] sm:$0xff] %v401
        %410 = vst [vmem:[%s240 + $0x8] sm:$0xff] %v402
        %411 = vst [vmem:[%s240 + $0x10] sm:$0xff] %v403
        %412 = vst [vmem:[%s240 + $0x18] sm:$0xff] %v404
        %413 = vst [vmem:[%s240 + $0x20] sm:$0xff] %v405
        %414 = vst [vmem:[%s240 + $0x28] sm:$0xff] %v406
        %415 = vst [vmem:[%s240 + $0x30] sm:$0xff] %v407
        %416 = vst [vmem:[%s240 + $0x38] sm:$0xff] %v408
        %s417 = sand.u32 %s118, 1
        %s418 = scalar_lea.sflag [#allocation5], %s417
        %s419 = sand.u32 %s118, 1
        %s420 = smul.addr %s419, 64
        %s421 = scalar_lea.vmem [#allocation6], %s420
        %s422 = sand.u32 %s146, 1
        %s423 = scalar_lea.sflag [#allocation8], %s422
        %s424 = sand.u32 %s146, 1
        %s425 = smul.addr %s424, 2
        %s426 = scalar_lea.vmem [#allocation7], %s425
        // Predicated region
        $region37: #{tpu_custom_call.1} parent=31 // pred_check
          %p427 = pneg %p128
        $region38: #{tpu_custom_call.1} parent=31 // pred_check_branch
          %429 = sbr.rel (%p427) target = $region40
        $region39: #{tpu_custom_call.1} parent=31 // pred_region
          %s430 = smul.u32 2, %s31
          %s432 = ssub.s32 1024, 1024
          %433 = vsyncadd %s418, %s432
          %s434 = smul.addr %s30, 8
          %s435 = sadd.s32 %s430, %s434
          %s436 = smul.addr %s435, 128
          %s437 = scalar_lea.hbm %s3, %s436
          %s438 = sshll.u32 %s421, 4
          %s439 = int_to_ptr.vmem [resolvable:$true] %s438
          %444 = dma.vmem_to_hbm [thread:$0]  %s439, 1024, %s437, %s418, 256, 256, 16
        $region40: #{tpu_custom_call.1} parent=31 // pred_fallthru
          _
        // Predicated region
        $region41: #{tpu_custom_call.1} parent=31 // pred_check
          %p445 = pneg %p156
        $region42: #{tpu_custom_call.1} parent=31 // pred_check_branch
          %447 = sbr.rel (%p445) target = $region44
        $region43: #{tpu_custom_call.1} parent=31 // pred_region
          %s448 = smul.u32 2, %s31
          %s450 = ssub.s32 32, 32
          %451 = vsyncadd %s423, %s450
          %s452 = smul.addr %s30, 2
          %s453 = sadd.s32 %s448, %s452
          %s454 = smul.addr %s453, 16
          %s455 = scalar_lea.hbm %s4, %s454
          %s457 = sshll.u32 %s426, 4
          %s458 = int_to_ptr.vmem [resolvable:$true] %s457
          %460 = dma.vmem_to_hbm [thread:$0]  %s458, 32, %s455, %s423
        $region44: #{tpu_custom_call.1} parent=31 // pred_fallthru
          _
      $region32: #{tpu_custom_call.1} parent=5 // pred_fallthru
        _
      %p461 = scmp.le.s32.totalorder 2, %s21
      // Predicated region
      $region45: #{tpu_custom_call.1} parent=5 // pred_check
        %p462 = pneg %p461
      $region46: #{tpu_custom_call.1} parent=5 // pred_check_branch
        %464 = sbr.rel (%p462) target = $region48
      $region47: #{tpu_custom_call.1} parent=5 // pred_region
        %s465 = ssub.s32 %s21, 2
        // Predicated region
        $region49: #{tpu_custom_call.1} parent=47 // pred_check
          %p466 = pneg %p134
        $region50: #{tpu_custom_call.1} parent=47 // pred_check_branch
          %468 = sbr.rel (%p466) target = $region52
        $region51: #{tpu_custom_call.1} parent=47 // pred_region
          %s469 = sand.u32 %s119, 1
          %s470 = scalar_lea.sflag [#allocation5], %s469
          %s471 = sand.u32 %s119, 1
          %s472 = smul.addr %s471, 64
          %s473 = scalar_lea.vmem [#allocation6], %s472
          %474 = dma.done %s470, 1024
        $region52: #{tpu_custom_call.1} parent=47 // pred_fallthru
          _
        // Predicated region
        $region53: #{tpu_custom_call.1} parent=47 // pred_check
          %p475 = pneg %p162
        $region54: #{tpu_custom_call.1} parent=47 // pred_check_branch
          %477 = sbr.rel (%p475) target = $region56
        $region55: #{tpu_custom_call.1} parent=47 // pred_region
          %s478 = sand.u32 %s147, 1
          %s479 = scalar_lea.sflag [#allocation8], %s478
          %s480 = sand.u32 %s147, 1
          %s481 = smul.addr %s480, 2
          %s482 = scalar_lea.vmem [#allocation7], %s481
          %483 = dma.done %s479, 32
        $region56: #{tpu_custom_call.1} parent=47 // pred_fallthru
          _
      $region48: #{tpu_custom_call.1} parent=5 // pred_fallthru
        _
    $region6: #{tpu_custom_call.1} parent=1 // loop_footer
      %s25 = sadd.s32 1, %s21
    $region7: #{tpu_custom_call.1} parent=1 // loop_footer_branch
      %20 = sbr.rel target = $region3
    $region8: #{tpu_custom_call.1} parent=1 // loop_exit
      _
    %484 = vsyncpa [#allocation4], 1
    %s485 = scalar_lea.sflag [#allocation4], 1
    %486 = vsyncpa %s485, 1
    %487 = vsyncpa [#allocation5], 1
    %s488 = scalar_lea.sflag [#allocation5], 1
    %489 = vsyncpa %s488, 1
    %490 = vsyncpa [#allocation8], 1
    %s491 = scalar_lea.sflag [#allocation8], 1
    %492 = vsyncpa %s491, 1

</llo_original>
